<compile_context>
chip_gen: v5e
topology: v5e:2x2
jax: 0.10.0
libtpu: 0.0.40
codegen_flags: <defaults>
</compile_context>

<pallas_src>
import functools

import jax
import jax.numpy as jnp
from jax.experimental import pallas as pl
from jax.experimental.pallas import tpu as pltpu


LANE = 128   # vreg lane width


def _round_up(n, m):
    return ((n + m - 1) // m) * m


def _cdiv(a, b):
    return (a + b - 1) // b


# ----------------------------------------------------------------------------
# Per-generation configuration.
# ----------------------------------------------------------------------------
def _tpu_config():
    """VMEM budget / compiler limit, M-tile floor, TensorCore count per chip."""
    kind = ""
    try:
        kind = jax.devices()[0].device_kind.lower()
    except Exception:
        pass
    if "7" in kind:
        # v7x: 64 MiB physical VMEM, 2 TensorCores, 2x256x256 MXU.
        return dict(vmem_budget=40 << 20, vmem_limit=48 << 20, m_floor=256, cores=2)
    if "v6" in kind or "trillium" in kind:
        # v6e: 128 MiB physical VMEM, 1 TensorCore, 2x256x256 MXU.
        return dict(vmem_budget=88 << 20, vmem_limit=100 << 20, m_floor=256, cores=1)
    if "v5" in kind or "v4" in kind:
        # v5e/v5p/v4: 128 MiB physical VMEM, 1 TensorCore, 128-wide MXU.
        return dict(vmem_budget=88 << 20, vmem_limit=100 << 20, m_floor=128, cores=1)
    # Unknown chip: stay under the most conservative default scoped limits.
    return dict(vmem_budget=14 << 20, vmem_limit=None, m_floor=128, cores=1)


# ----------------------------------------------------------------------------
# Kernel: whole MLP for one batch tile.
#   refs = (x, w0, b0, w1, b1, ..., w_{L-1}, b_{L-1}, out)
#   wi: [n_i, k_i] (compute_dtype, LoRA pre-merged, hidden dims lane-padded)
#   bi: [1, k_i]   (f32)
# ----------------------------------------------------------------------------
def _fused_mlp_kernel(x_ref, *refs, num_layers, sigmoid_output, compute_dtype):
    o_ref = refs[-1]
    wb = refs[:-1]

    h = x_ref[...].astype(compute_dtype)                       # [bt, in_dim]
    for i in range(num_layers):
        w = wb[2 * i][...]                                     # [n_i, k_i]
        b = wb[2 * i + 1][...]                                 # [1, k_i] f32
        # MXU matmul with f32 accumulation; bias / activation are VPU/EUP filler.
        y = jnp.dot(h, w, preferred_element_type=jnp.float32) + b
        if i < num_layers - 1:
            h = jnp.maximum(y, 0.0).astype(compute_dtype)      # ReLU on hidden layers
        else:
            if sigmoid_output:
                y = jax.nn.sigmoid(y)
            o_ref[...] = y.astype(o_ref.dtype)


# ----------------------------------------------------------------------------
# Parameter preparation (done once): merge LoRA into the main weight and pad
# only the *internal* (hidden) feature dims to lane multiples.  The model's
# input dim (layer 0) and output dim (last layer) stay unpadded so x needs no
# wrapper padding and the output needs no trailing feature slice.
# ----------------------------------------------------------------------------
def prepare_lora_mlp_params(params, *, compute_dtype=jnp.bfloat16):
    """params: list of dicts with w:[n,k], b:[k], wd:[n,rank], wu:[rank,k].

    Returns (prepared, shapes): prepared[i] = (w [n_p,k_p] compute_dtype,
    b [1,k_p] f32); shapes[i] = (n_p, k_p).
    """
    # NOTE: for trained adapters where ||Wd@Wu|| << bf16 ulp of W, pass
    # compute_dtype=jnp.float32 (or keep the low-rank term separate) to avoid
    # quantizing the LoRA contribution away.
    num_layers = len(params)
    prepared, shapes = [], []
    for i, p in enumerate(params):
        w, b, wd, wu = p["w"], p["b"], p["wd"], p["wu"]
        n, k = w.shape
        # Inference-time LoRA merge: x@W + (x@Wd)@Wu == x@(W + Wd@Wu)
        w_eff = (w + wd @ wu).astype(jnp.float32)
        n_p = n if i == 0 else _round_up(n, LANE)
        k_p = k if i == num_layers - 1 else _round_up(k, LANE)
        w_pad = jnp.zeros((n_p, k_p), jnp.float32).at[:n, :k].set(w_eff)
        b_pad = jnp.zeros((1, k_p), jnp.float32).at[0, :k].set(b.astype(jnp.float32))
        prepared.append((w_pad.astype(compute_dtype), b_pad))
        shapes.append((n_p, k_p))
    return prepared, shapes


# ----------------------------------------------------------------------------
# VMEM footprint estimate + batch-tile choice.
# ----------------------------------------------------------------------------
def _estimate_vmem_bytes(bt, shapes, csize, x_size, o_size, single_buffer_weights):
    in_dim, out_dim = shapes[0][0], shapes[-1][1]
    max_f = max(max(n, k) for n, k in shapes)
    wbuf = 1 if single_buffer_weights else 2
    weight_bytes = wbuf * sum(n * k * csize + k * 4 for n, k in shapes)
    io_bytes = 2 * bt * (in_dim * x_size + out_dim * o_size)   # double-buffered x / out
    act_bytes = 4 * bt * max_f * 4                             # live f32 acc + casts
    # 30% headroom for Mosaic internal matmul scratch / relayouts.
    return int((weight_bytes + io_bytes + act_bytes) * 1.3)


def _choose_batch_tiling(batch, shapes, csize, x_size, o_size, sub, cfg):
    bt = min(512, _round_up(batch, sub))
    floor = min(cfg["m_floor"], bt)
    # Shrink M only down to the MXU-friendly floor; below that the systolic
    # array runs mostly idle and weight streaming would be the right fix.
    while bt > floor and _estimate_vmem_bytes(
            bt, shapes, csize, x_size, o_size, True) > cfg["vmem_budget"]:
        bt = max(floor, _round_up(bt // 2, sub))
    # TODO(synk): add a weight-streaming path (grid axis over layers / K-tiles or
    # pltpu.emit_pipeline) when the resident weight set exceeds ~half the VMEM
    # budget (matters first on v7x's 64 MiB VMEM) instead of relying on all-resident.
    num_tiles = _cdiv(batch, bt)
    # Guarantee >= 2 grid steps on multi-TensorCore chips (v7x) when possible.
    if cfg["cores"] > 1 and num_tiles < cfg["cores"] and batch > sub:
        num_tiles = min(cfg["cores"], _cdiv(batch, sub))
    # Equalize tile sizes to cut dead-row padding in the last (ragged) tile.
    bt = _round_up(_cdiv(batch, num_tiles), sub)
    grid_n = _cdiv(batch, bt)
    return bt, grid_n


# ----------------------------------------------------------------------------
# Forward wrapper: one pallas_call for the whole MLP, batch-tiled grid.
# ----------------------------------------------------------------------------
def mlp_with_lora_forward(x, prepared, shapes, *, sigmoid_output=False,
                          compute_dtype=jnp.bfloat16, out_dtype=jnp.bfloat16):
    batch, in_dim = x.shape
    num_layers = len(prepared)
    assert in_dim == shapes[0][0], "x feature dim must match layer-0 input dim"
    out_dim = shapes[-1][1]

    cfg = _tpu_config()
    csize = jnp.dtype(compute_dtype).itemsize
    x_size = jnp.dtype(x.dtype).itemsize
    o_size = jnp.dtype(out_dtype).itemsize
    sub = 16 if csize < 4 else 8          # bf16 packs 2 rows per sublane

    bt, grid_n = _choose_batch_tiling(batch, shapes, csize, x_size, o_size, sub, cfg)

    flops = 2 * batch * sum(n * k for n, k in shapes)
    transcendentals = batch * out_dim if sigmoid_output else 0
    bytes_accessed = (batch * in_dim * x_size
                      + sum(w.size * csize + b.size * 4 for w, b in prepared)
                      + batch * out_dim * o_size)

    kernel = functools.partial(_fused_mlp_kernel,
                               num_layers=num_layers,
                               sigmoid_output=sigmoid_output,
                               compute_dtype=compute_dtype)

    def build_and_run(single_buffer_weights):
        if single_buffer_weights:
            # Resident operands (constant index_map) don't need double buffers.
            w_kw = dict(pipeline_mode=pl.Buffered(1))
        else:
            w_kw = {}
        in_specs = [pl.BlockSpec((bt, in_dim), lambda i: (i, 0))]
        flat_args = [x]
        for (w_p, b_p), (n_p, k_p) in zip(prepared, shapes):
            in_specs.append(pl.BlockSpec((n_p, k_p), lambda i: (0, 0), **w_kw))
            in_specs.append(pl.BlockSpec((1, k_p), lambda i: (0, 0), **w_kw))
            flat_args += [w_p, b_p]
        return pl.pallas_call(
            kernel,
            out_shape=jax.ShapeDtypeStruct((batch, out_dim), out_dtype),
            grid=(grid_n,),
            in_specs=in_specs,
            out_specs=pl.BlockSpec((bt, out_dim), lambda i: (i, 0)),
            compiler_params=pltpu.CompilerParams(
                dimension_semantics=("parallel",),
                vmem_limit_bytes=cfg["vmem_limit"]),
            cost_estimate=pl.CostEstimate(flops=flops,
                                          transcendentals=transcendentals,
                                          bytes_accessed=bytes_accessed),
        )(*flat_args)

    try:
        return build_and_run(True)
    except Exception:
        # Fallback if this JAX build rejects pipeline_mode=pl.Buffered(1).
        return build_and_run(False)


# ----------------------------------------------------------------------------
# Synthetic parameters mirroring MLPWithLoRA.__init__ shapes.
# ----------------------------------------------------------------------------
def init_mlp_with_lora_params(key, input_dim, hidden_dim, output_dim,
                              num_layers, rank=32, init_std=0.001):
    h = [hidden_dim] * (num_layers - 1)
    dims_in = [input_dim] + h
    dims_out = h + [output_dim]
    params = []
    for n, k in zip(dims_in, dims_out):
        key, k1, k2, k3, k4 = jax.random.split(key, 5)
        bound = 1.0 / jnp.sqrt(jnp.float32(n))
        # nn.Linear(n, k): weight [k, n] stored transposed as [n, k]; bias [k]
        w = jax.random.uniform(k1, (n, k), jnp.float32, -bound, bound)
        bias = jax.random.uniform(k2, (k,), jnp.float32, -bound, bound)
        # LoRA: down [rank, n] -> [n, rank]; up [k, rank] -> [rank, k]; N(0, init_std)
        wd = init_std * jax.random.normal(k3, (n, rank), jnp.float32)
        wu = init_std * jax.random.normal(k4, (rank, k), jnp.float32)
        params.append(dict(w=w, b=bias, wd=wd, wu=wu))
    return params


def _reference_forward(x, params, *, sigmoid_output=False):
    """Pure-JAX f32 reference with the LoRA path kept explicit (un-merged)."""
    num_layers = len(params)
    for i, p in enumerate(params):
        y = x @ p["w"] + p["b"] + (x @ p["wd"]) @ p["wu"]
        if i < num_layers - 1:
            y = jnp.maximum(y, 0.0)
        x = y
    if sigmoid_output:
        x = jax.nn.sigmoid(x)
    return x


if __name__ == "__main__":
    key = jax.random.PRNGKey(0)
    key_x, key_p = jax.random.split(key)

    batch = 8
    input_dim, hidden_dim, output_dim = 32, 64, 16
    num_layers = 3
    rank = 8
    sigmoid_output = True

    x = jax.random.normal(key_x, (batch, input_dim), jnp.float32)
    params = init_mlp_with_lora_params(
        key_p, input_dim, hidden_dim, output_dim, num_layers, rank=rank)

    prepared, shapes = prepare_lora_mlp_params(params, compute_dtype=jnp.bfloat16)
    out = mlp_with_lora_forward(x, prepared, shapes, sigmoid_output=sigmoid_output)
    out = jax.block_until_ready(out)

    ref = _reference_forward(x, params, sigmoid_output=sigmoid_output)
    assert out.shape == (batch, output_dim)
    # bf16 MXU inputs / bf16 output store with f32 accumulation -> loosened tol.
    out_f32 = out.astype(jnp.float32)
    assert jnp.allclose(out_f32, ref, atol=2e-2, rtol=2e-2), (
        float(jnp.max(jnp.abs(out_f32 - ref))))

    print("KERNEL_OK")
</pallas_src>

<mosaic_0001>
module attributes {stable_mosaic.version = 11 : i64} {
  func.func @_fused_mlp_kernel(%arg0: i32, %arg1: memref<16x32xf32, #tpu.memory_space<vmem>>, %arg2: memref<32x128xbf16, #tpu.memory_space<vmem>>, %arg3: memref<1x128xf32, #tpu.memory_space<vmem>>, %arg4: memref<128x128xbf16, #tpu.memory_space<vmem>>, %arg5: memref<1x128xf32, #tpu.memory_space<vmem>>, %arg6: memref<128x16xbf16, #tpu.memory_space<vmem>>, %arg7: memref<1x16xf32, #tpu.memory_space<vmem>>, %arg8: memref<16x16xbf16, #tpu.memory_space<vmem>>) attributes {dimension_semantics = [#tpu.dimension_semantics<parallel>], iteration_bounds = array<i64: 1>, scalar_prefetch = 0 : i64, scratch_operands = 0 : i64, tpu.core_type = #tpu.core_type<tc>, window_params = [{transform_indices = @transform_0, window_bounds = array<i64: 16, 32>}, {pipeline_mode = #tpu.pipeline_mode<synchronous>, transform_indices = @transform_1, window_bounds = array<i64: 32, 128>}, {pipeline_mode = #tpu.pipeline_mode<synchronous>, transform_indices = @transform_2, window_bounds = array<i64: 1, 128>}, {pipeline_mode = #tpu.pipeline_mode<synchronous>, transform_indices = @transform_3, window_bounds = array<i64: 128, 128>}, {pipeline_mode = #tpu.pipeline_mode<synchronous>, transform_indices = @transform_4, window_bounds = array<i64: 1, 128>}, {pipeline_mode = #tpu.pipeline_mode<synchronous>, transform_indices = @transform_5, window_bounds = array<i64: 128, 16>}, {pipeline_mode = #tpu.pipeline_mode<synchronous>, transform_indices = @transform_6, window_bounds = array<i64: 1, 16>}, {transform_indices = @transform_7, window_bounds = array<i64: 16, 16>}]} {
    %c0 = arith.constant 0 : index
    %c0_0 = arith.constant 0 : index
    %0 = vector.load %arg1[%c0, %c0_0] : memref<16x32xf32, #tpu.memory_space<vmem>>, vector<16x32xf32>
    %1 = arith.truncf %0 : vector<16x32xf32> to vector<16x32xbf16>
    %c0_1 = arith.constant 0 : index
    %c0_2 = arith.constant 0 : index
    %2 = vector.load %arg2[%c0_1, %c0_2] : memref<32x128xbf16, #tpu.memory_space<vmem>>, vector<32x128xbf16>
    %c0_3 = arith.constant 0 : index
    %c0_4 = arith.constant 0 : index
    %3 = vector.load %arg3[%c0_3, %c0_4] : memref<1x128xf32, #tpu.memory_space<vmem>>, vector<1x128xf32>
    %cst = arith.constant dense<0.000000e+00> : vector<16x128xf32>
    %4 = tpu.matmul %1, %2, %cst {dimension_numbers = #tpu.dot_dimension_numbers<[1], [0], [0], [1], [0, 0, 1, 1], [], []>} : vector<16x32xbf16>, vector<32x128xbf16>, vector<16x128xf32> -> vector<16x128xf32>
    %5 = vector.broadcast %3 : vector<1x128xf32> to vector<16x128xf32>
    %6 = arith.addf %4, %5 : vector<16x128xf32>
    %cst_5 = arith.constant 0.000000e+00 : f32
    %7 = vector.broadcast %cst_5 : f32 to vector<16x128xf32>
    %8 = arith.maximumf %6, %7 : vector<16x128xf32>
    %9 = arith.truncf %8 : vector<16x128xf32> to vector<16x128xbf16>
    %c0_6 = arith.constant 0 : index
    %c0_7 = arith.constant 0 : index
    %10 = vector.load %arg4[%c0_6, %c0_7] : memref<128x128xbf16, #tpu.memory_space<vmem>>, vector<128x128xbf16>
    %c0_8 = arith.constant 0 : index
    %c0_9 = arith.constant 0 : index
    %11 = vector.load %arg5[%c0_8, %c0_9] : memref<1x128xf32, #tpu.memory_space<vmem>>, vector<1x128xf32>
    %cst_10 = arith.constant dense<0.000000e+00> : vector<16x128xf32>
    %12 = tpu.matmul %9, %10, %cst_10 {dimension_numbers = #tpu.dot_dimension_numbers<[1], [0], [0], [1], [0, 0, 1, 1], [], []>} : vector<16x128xbf16>, vector<128x128xbf16>, vector<16x128xf32> -> vector<16x128xf32>
    %13 = vector.broadcast %11 : vector<1x128xf32> to vector<16x128xf32>
    %14 = arith.addf %12, %13 : vector<16x128xf32>
    %cst_11 = arith.constant 0.000000e+00 : f32
    %15 = vector.broadcast %cst_11 : f32 to vector<16x128xf32>
    %16 = arith.maximumf %14, %15 : vector<16x128xf32>
    %17 = arith.truncf %16 : vector<16x128xf32> to vector<16x128xbf16>
    %c0_12 = arith.constant 0 : index
    %c0_13 = arith.constant 0 : index
    %18 = vector.load %arg6[%c0_12, %c0_13] : memref<128x16xbf16, #tpu.memory_space<vmem>>, vector<128x16xbf16>
    %c0_14 = arith.constant 0 : index
    %c0_15 = arith.constant 0 : index
    %19 = vector.load %arg7[%c0_14, %c0_15] : memref<1x16xf32, #tpu.memory_space<vmem>>, vector<1x16xf32>
    %cst_16 = arith.constant dense<0.000000e+00> : vector<16x16xf32>
    %20 = tpu.matmul %17, %18, %cst_16 {dimension_numbers = #tpu.dot_dimension_numbers<[1], [0], [0], [1], [0, 0, 1, 1], [], []>} : vector<16x128xbf16>, vector<128x16xbf16>, vector<16x16xf32> -> vector<16x16xf32>
    %21 = vector.broadcast %19 : vector<1x16xf32> to vector<16x16xf32>
    %22 = arith.addf %20, %21 : vector<16x16xf32>
    %23 = arith.negf %22 : vector<16x16xf32>
    %24 = math.exp %23 : vector<16x16xf32>
    %cst_17 = arith.constant 1.000000e+00 : f32
    %25 = vector.broadcast %cst_17 : f32 to vector<16x16xf32>
    %26 = arith.addf %25, %24 : vector<16x16xf32>
    %27 = arith.divf %25, %26 : vector<16x16xf32>
    %28 = arith.truncf %27 : vector<16x16xf32> to vector<16x16xbf16>
    %c0_18 = arith.constant 0 : index
    %c0_19 = arith.constant 0 : index
    %29 = vector.load %arg8[%c0_18, %c0_19] : memref<16x16xbf16, #tpu.memory_space<vmem>>, vector<16x16xbf16>
    tpu.vector_store %arg8[%c0_18, %c0_19], %28 {strides = array<i32>} : memref<16x16xbf16, #tpu.memory_space<vmem>>, vector<16x16xbf16>,
    return
  }
  func.func @transform_0(%arg0: i32) -> (i32, i32) {
    %c0_i32 = arith.constant 0 : i32
    %c0_i32_0 = arith.constant 0 : i32
    return %arg0, %c0_i32 : i32, i32
  }
  func.func @transform_1(%arg0: i32) -> (i32, i32) {
    %c0_i32 = arith.constant 0 : i32
    %c0_i32_0 = arith.constant 0 : i32
    %c0_i32_1 = arith.constant 0 : i32
    return %c0_i32, %c0_i32_0 : i32, i32
  }
  func.func @transform_2(%arg0: i32) -> (i32, i32) {
    %c0_i32 = arith.constant 0 : i32
    %c0_i32_0 = arith.constant 0 : i32
    %c0_i32_1 = arith.constant 0 : i32
    return %c0_i32, %c0_i32_0 : i32, i32
  }
  func.func @transform_3(%arg0: i32) -> (i32, i32) {
    %c0_i32 = arith.constant 0 : i32
    %c0_i32_0 = arith.constant 0 : i32
    %c0_i32_1 = arith.constant 0 : i32
    return %c0_i32, %c0_i32_0 : i32, i32
  }
  func.func @transform_4(%arg0: i32) -> (i32, i32) {
    %c0_i32 = arith.constant 0 : i32
    %c0_i32_0 = arith.constant 0 : i32
    %c0_i32_1 = arith.constant 0 : i32
    return %c0_i32, %c0_i32_0 : i32, i32
  }
  func.func @transform_5(%arg0: i32) -> (i32, i32) {
    %c0_i32 = arith.constant 0 : i32
    %c0_i32_0 = arith.constant 0 : i32
    %c0_i32_1 = arith.constant 0 : i32
    return %c0_i32, %c0_i32_0 : i32, i32
  }
  func.func @transform_6(%arg0: i32) -> (i32, i32) {
    %c0_i32 = arith.constant 0 : i32
    %c0_i32_0 = arith.constant 0 : i32
    %c0_i32_1 = arith.constant 0 : i32
    return %c0_i32, %c0_i32_0 : i32, i32
  }
  func.func @transform_7(%arg0: i32) -> (i32, i32) {
    %c0_i32 = arith.constant 0 : i32
    %c0_i32_0 = arith.constant 0 : i32
    return %arg0, %c0_i32 : i32, i32
  }
}

module attributes {stable_mosaic.version = 11 : i64} {
  func.func @_fused_mlp_kernel(%arg0: i32, %arg1: memref<16x32xf32, #tpu.memory_space<vmem>>, %arg2: memref<32x128xbf16, #tpu.memory_space<vmem>>, %arg3: memref<1x128xf32, #tpu.memory_space<vmem>>, %arg4: memref<128x128xbf16, #tpu.memory_space<vmem>>, %arg5: memref<1x128xf32, #tpu.memory_space<vmem>>, %arg6: memref<128x16xbf16, #tpu.memory_space<vmem>>, %arg7: memref<1x16xf32, #tpu.memory_space<vmem>>, %arg8: memref<16x16xbf16, #tpu.memory_space<vmem>>) attributes {dimension_semantics = [#tpu.dimension_semantics<parallel>], iteration_bounds = array<i64: 1>, scalar_prefetch = 0 : i64, scratch_operands = 0 : i64, tpu.core_type = #tpu.core_type<tc>, window_params = [{transform_indices = @transform_0, window_bounds = array<i64: 16, 32>}, {pipeline_mode = #tpu.pipeline_mode<synchronous>, transform_indices = @transform_1, window_bounds = array<i64: 32, 128>}, {pipeline_mode = #tpu.pipeline_mode<synchronous>, transform_indices = @transform_2, window_bounds = array<i64: 1, 128>}, {pipeline_mode = #tpu.pipeline_mode<synchronous>, transform_indices = @transform_3, window_bounds = array<i64: 128, 128>}, {pipeline_mode = #tpu.pipeline_mode<synchronous>, transform_indices = @transform_4, window_bounds = array<i64: 1, 128>}, {pipeline_mode = #tpu.pipeline_mode<synchronous>, transform_indices = @transform_5, window_bounds = array<i64: 128, 16>}, {pipeline_mode = #tpu.pipeline_mode<synchronous>, transform_indices = @transform_6, window_bounds = array<i64: 1, 16>}, {transform_indices = @transform_7, window_bounds = array<i64: 16, 16>}]} {
    %c0 = arith.constant 0 : index
    %c0_0 = arith.constant 0 : index
    %0 = vector.load %arg1[%c0, %c0_0] : memref<16x32xf32, #tpu.memory_space<vmem>>, vector<16x32xf32>
    %1 = arith.truncf %0 : vector<16x32xf32> to vector<16x32xbf16>
    %c0_1 = arith.constant 0 : index
    %c0_2 = arith.constant 0 : index
    %2 = vector.load %arg2[%c0_1, %c0_2] : memref<32x128xbf16, #tpu.memory_space<vmem>>, vector<32x128xbf16>
    %c0_3 = arith.constant 0 : index
    %c0_4 = arith.constant 0 : index
    %3 = vector.load %arg3[%c0_3, %c0_4] : memref<1x128xf32, #tpu.memory_space<vmem>>, vector<1x128xf32>
    %cst = arith.constant dense<0.000000e+00> : vector<16x128xf32>
    %4 = tpu.matmul %1, %2, %cst {dimension_numbers = #tpu.dot_dimension_numbers<[1], [0], [0], [1], [0, 0, 1, 1], [], []>} : vector<16x32xbf16>, vector<32x128xbf16>, vector<16x128xf32> -> vector<16x128xf32>
    %5 = vector.broadcast %3 : vector<1x128xf32> to vector<16x128xf32>
    %6 = arith.addf %4, %5 : vector<16x128xf32>
    %cst_5 = arith.constant 0.000000e+00 : f32
    %7 = vector.broadcast %cst_5 : f32 to vector<16x128xf32>
    %8 = arith.maximumf %6, %7 : vector<16x128xf32>
    %9 = arith.truncf %8 : vector<16x128xf32> to vector<16x128xbf16>
    %c0_6 = arith.constant 0 : index
    %c0_7 = arith.constant 0 : index
    %10 = vector.load %arg4[%c0_6, %c0_7] : memref<128x128xbf16, #tpu.memory_space<vmem>>, vector<128x128xbf16>
    %c0_8 = arith.constant 0 : index
    %c0_9 = arith.constant 0 : index
    %11 = vector.load %arg5[%c0_8, %c0_9] : memref<1x128xf32, #tpu.memory_space<vmem>>, vector<1x128xf32>
    %cst_10 = arith.constant dense<0.000000e+00> : vector<16x128xf32>
    %12 = tpu.matmul %9, %10, %cst_10 {dimension_numbers = #tpu.dot_dimension_numbers<[1], [0], [0], [1], [0, 0, 1, 1], [], []>} : vector<16x128xbf16>, vector<128x128xbf16>, vector<16x128xf32> -> vector<16x128xf32>
    %13 = vector.broadcast %11 : vector<1x128xf32> to vector<16x128xf32>
    %14 = arith.addf %12, %13 : vector<16x128xf32>
    %cst_11 = arith.constant 0.000000e+00 : f32
    %15 = vector.broadcast %cst_11 : f32 to vector<16x128xf32>
    %16 = arith.maximumf %14, %15 : vector<16x128xf32>
    %17 = arith.truncf %16 : vector<16x128xf32> to vector<16x128xbf16>
    %c0_12 = arith.constant 0 : index
    %c0_13 = arith.constant 0 : index
    %18 = vector.load %arg6[%c0_12, %c0_13] : memref<128x16xbf16, #tpu.memory_space<vmem>>, vector<128x16xbf16>
    %c0_14 = arith.constant 0 : index
    %c0_15 = arith.constant 0 : index
    %19 = vector.load %arg7[%c0_14, %c0_15] : memref<1x16xf32, #tpu.memory_space<vmem>>, vector<1x16xf32>
    %cst_16 = arith.constant dense<0.000000e+00> : vector<16x16xf32>
    %20 = tpu.matmul %17, %18, %cst_16 {dimension_numbers = #tpu.dot_dimension_numbers<[1], [0], [0], [1], [0, 0, 1, 1], [], []>} : vector<16x128xbf16>, vector<128x16xbf16>, vector<16x16xf32> -> vector<16x16xf32>
    %21 = vector.broadcast %19 : vector<1x16xf32> to vector<16x16xf32>
    %22 = arith.addf %20, %21 : vector<16x16xf32>
    %23 = arith.negf %22 : vector<16x16xf32>
    %24 = math.exp %23 : vector<16x16xf32>
    %cst_17 = arith.constant 1.000000e+00 : f32
    %25 = vector.broadcast %cst_17 : f32 to vector<16x16xf32>
    %26 = arith.addf %25, %24 : vector<16x16xf32>
    %27 = arith.divf %25, %26 : vector<16x16xf32>
    %28 = arith.truncf %27 : vector<16x16xf32> to vector<16x16xbf16>
    %c0_18 = arith.constant 0 : index
    %c0_19 = arith.constant 0 : index
    %29 = vector.load %arg8[%c0_18, %c0_19] : memref<16x16xbf16, #tpu.memory_space<vmem>>, vector<16x16xbf16>
    tpu.vector_store %arg8[%c0_18, %c0_19], %28 {strides = array<i32>} : memref<16x16xbf16, #tpu.memory_space<vmem>>, vector<16x16xbf16>,
    return
  }
  func.func @transform_0(%arg0: i32) -> (i32, i32) {
    %c0_i32 = arith.constant 0 : i32
    %c0_i32_0 = arith.constant 0 : i32
    return %arg0, %c0_i32 : i32, i32
  }
  func.func @transform_1(%arg0: i32) -> (i32, i32) {
    %c0_i32 = arith.constant 0 : i32
    %c0_i32_0 = arith.constant 0 : i32
    %c0_i32_1 = arith.constant 0 : i32
    return %c0_i32, %c0_i32_0 : i32, i32
  }
  func.func @transform_2(%arg0: i32) -> (i32, i32) {
    %c0_i32 = arith.constant 0 : i32
    %c0_i32_0 = arith.constant 0 : i32
    %c0_i32_1 = arith.constant 0 : i32
    return %c0_i32, %c0_i32_0 : i32, i32
  }
  func.func @transform_3(%arg0: i32) -> (i32, i32) {
    %c0_i32 = arith.constant 0 : i32
    %c0_i32_0 = arith.constant 0 : i32
    %c0_i32_1 = arith.constant 0 : i32
    return %c0_i32, %c0_i32_0 : i32, i32
  }
  func.func @transform_4(%arg0: i32) -> (i32, i32) {
    %c0_i32 = arith.constant 0 : i32
    %c0_i32_0 = arith.constant 0 : i32
    %c0_i32_1 = arith.constant 0 : i32
    return %c0_i32, %c0_i32_0 : i32, i32
  }
  func.func @transform_5(%arg0: i32) -> (i32, i32) {
    %c0_i32 = arith.constant 0 : i32
    %c0_i32_0 = arith.constant 0 : i32
    %c0_i32_1 = arith.constant 0 : i32
    return %c0_i32, %c0_i32_0 : i32, i32
  }
  func.func @transform_6(%arg0: i32) -> (i32, i32) {
    %c0_i32 = arith.constant 0 : i32
    %c0_i32_0 = arith.constant 0 : i32
    %c0_i32_1 = arith.constant 0 : i32
    return %c0_i32, %c0_i32_0 : i32, i32
  }
  func.func @transform_7(%arg0: i32) -> (i32, i32) {
    %c0_i32 = arith.constant 0 : i32
    %c0_i32_0 = arith.constant 0 : i32
    return %arg0, %c0_i32 : i32, i32
  }
}

</mosaic_0001>

<llo_original>
// kernel: tpu_custom_call.1
$region0: #{tpu_custom_call.1}
  #allocation0 [shape = 'u32[]', space=smem, size = 0x4, offset = 0x4, fixed_abs, tag = 'smem constant byte address 0x4 - core index']
  #allocation1 [shape = 'u32[72,128]{1,0:T(1,128)}', space=vmem, size = 0x9000, scoped, tag = 'internal scratch']
  %s0 = inlined_call_operand.vmem [shape: f32[8,32], index: 0, kind: input, shape index: {}]
  %s1 = inlined_call_operand.hbm [shape: bf16[32,128], index: 1, kind: input, shape index: {}]
  %s2 = inlined_call_operand.vmem [shape: f32[1,128], index: 2, kind: input, shape index: {}]
  %s3 = inlined_call_operand.vmem [shape: bf16[128,128], index: 3, kind: input, shape index: {}]
  %s4 = inlined_call_operand.vmem [shape: f32[1,128], index: 4, kind: input, shape index: {}]
  %s5 = inlined_call_operand.vmem [shape: bf16[128,16], index: 5, kind: input, shape index: {}]
  %s6 = inlined_call_operand.vmem [shape: f32[1,16], index: 6, kind: input, shape index: {}]
  %s7 = inlined_call_operand.hbm [shape: bf16[8,16], index: 7, kind: output, shape index: {}]
  %s8 = sld [smem:[#allocation0]]
  $region42: #{tpu_custom_call.1} parent=0
    _
  %s10 = ssub.s32 1, %s8
  %s11 = scalar_select 0, %s10, %s8
  $region1: #{tpu_custom_call.1} parent=0
    #allocation2 [shape = 'u8[8192]{0}', space=vmem, size = 0x2000, scoped, tag = 'input window, operand 1, single buffered']
    #allocation3 [shape = 's32[1]{0}', space=sflag, size = 0x4, scoped, tag = 'scoped memory for tpu_custom_call.1']
    #allocation4 [shape = 's32[1]{0}', space=sflag, size = 0x4, scoped, tag = 'scoped memory for tpu_custom_call.1']
    #allocation5 [shape = 'u8[4096]{0}', space=vmem, size = 0x1000, scoped, tag = 'output window, operand 0, single buffered']
    %12 = vsyncpa [#allocation3], 0
    %13 = vsyncpa [#allocation4], 0
    // Predicated region
    $region2: #{tpu_custom_call.1} parent=1 // pred_check
      _
    $region3: #{tpu_custom_call.1} parent=1 // pred_check_branch
      %15 = sbr.rel (0) target = $region5
    $region4: #{tpu_custom_call.1} parent=1 // pred_region
      _
    $region5: #{tpu_custom_call.1} parent=1 // pred_fallthru
      _
    // Predicated region
    $region6: #{tpu_custom_call.1} parent=1 // pred_check
      _
    $region7: #{tpu_custom_call.1} parent=1 // pred_check_branch
      %17 = sbr.rel (0) target = $region9
    $region8: #{tpu_custom_call.1} parent=1 // pred_region
      %19 = vsyncadd [#allocation3], 0
      %s20 = sshll.u32 %s1, 4
      %s21 = int_to_ptr.hbm [resolvable:$true] %s20
      %s22 = sshll.u32 [#allocation2], 4
      %s23 = int_to_ptr.vmem [resolvable:$true] %s22
      %28 = dma.hbm_to_vmem [thread:$0]  %s21, 256, %s23, [#allocation3], 64, 64, 4
    $region9: #{tpu_custom_call.1} parent=1 // pred_fallthru
      _
    // Predicated region
    $region10: #{tpu_custom_call.1} parent=1 // pred_check
      _
    $region11: #{tpu_custom_call.1} parent=1 // pred_check_branch
      %30 = sbr.rel (0) target = $region13
    $region12: #{tpu_custom_call.1} parent=1 // pred_region
      _
    $region13: #{tpu_custom_call.1} parent=1 // pred_fallthru
      _
    // Predicated region
    $region14: #{tpu_custom_call.1} parent=1 // pred_check
      _
    $region15: #{tpu_custom_call.1} parent=1 // pred_check_branch
      %32 = sbr.rel (0) target = $region17
    $region16: #{tpu_custom_call.1} parent=1 // pred_region
      _
    $region17: #{tpu_custom_call.1} parent=1 // pred_fallthru
      _
    // Predicated region
    $region18: #{tpu_custom_call.1} parent=1 // pred_check
      _
    $region19: #{tpu_custom_call.1} parent=1 // pred_check_branch
      %34 = sbr.rel (0) target = $region21
    $region20: #{tpu_custom_call.1} parent=1 // pred_region
      _
    $region21: #{tpu_custom_call.1} parent=1 // pred_fallthru
      _
    // Predicated region
    $region22: #{tpu_custom_call.1} parent=1 // pred_check
      _
    $region23: #{tpu_custom_call.1} parent=1 // pred_check_branch
      %36 = sbr.rel (0) target = $region25
    $region24: #{tpu_custom_call.1} parent=1 // pred_region
      _
    $region25: #{tpu_custom_call.1} parent=1 // pred_fallthru
      _
    // Predicated region
    $region26: #{tpu_custom_call.1} parent=1 // pred_check
      _
    $region27: #{tpu_custom_call.1} parent=1 // pred_check_branch
      %38 = sbr.rel (0) target = $region29
    $region28: #{tpu_custom_call.1} parent=1 // pred_region
      _
    $region29: #{tpu_custom_call.1} parent=1 // pred_fallthru
      _
    // Predicated region
    $region30: #{tpu_custom_call.1} parent=1 // pred_check
      _
    $region31: #{tpu_custom_call.1} parent=1 // pred_check_branch
      %40 = sbr.rel (0) target = $region33
    $region32: #{tpu_custom_call.1} parent=1 // pred_region
      %42 = dma.done [#allocation3], 256
    $region33: #{tpu_custom_call.1} parent=1 // pred_fallthru
      _
    %v44 = vld [vmem:[%s0] sm:$0xff]
    %v45 = vld [vmem:[%s0 + $0x8] sm:$0xff]
    %v46 = vpack.c.bf16 %v45, %v44
    %v47 = vld [vmem:[#allocation2] sm:$0xf]
    %v48 = vld [vmem:[#allocation2 + $0x4] sm:$0xf]
    %v49 = vld [vmem:[#allocation2 + $0x8] sm:$0xf]
    %v50 = vld [vmem:[#allocation2 + $0xc] sm:$0xf]
    %v51 = vld [vmem:[%s2] sm:$0x1]
    %v53 = vperm.slane %v51, 0
    %v59 = vunpack.c.l.b16 %v47
    %v60 = vunpack.c.l.b16 %v48
    %v61 = vunpack.c.l.b16 %v49
    %v62 = vunpack.c.l.b16 %v50
    %v63 = vpack.c.b16 %v60, %v59
    %v64 = vpack.c.b16 %v62, %v61
    %vm67 = vcmask 261120
    %v69 = vsel %vm67, %v46, 0
    %71 = vmatpush.bf16.msra.mxu0 0
    %72 = vmatpush.bf16.msra.mxu0 0
    %73 = vmatpush.bf16.msra.mxu0 0
    %74 = vmatpush.bf16.msra.mxu0 0
    %75 = vmatpush.bf16.msra.mxu0 0
    %76 = vmatpush.bf16.msra.mxu0 0
    %77 = vmatpush.bf16.msra.mxu0 %v64
    %78 = vmatpush.bf16.msra.mxu0 %v63
    %79 = vmatmul.bf16.gmra.mxu0 %v69
    %v80 = vpop.f32.mrf.mxu0
    %v81 = vadd.f32 %v53, %v80
    %v82 = vpop.f32.mrf.mxu0
    %v83 = vadd.f32 %v53, %v82
    %84 = vdwg.mxu0
    %v85 = vmax.f32 %v81, 0.0
    %v86 = vmax.f32 %v83, 0.0
    %v87 = vpack.c.bf16 %v86, %v85
    %v88 = vld [vmem:[%s3] sm:$0xf]
    %v89 = vld [vmem:[%s3 + $0x4] sm:$0xf]
    %v90 = vld [vmem:[%s3 + $0x8] sm:$0xf]
    %v91 = vld [vmem:[%s3 + $0xc] sm:$0xf]
    %v92 = vld [vmem:[%s3 + $0x10] sm:$0xf]
    %v93 = vld [vmem:[%s3 + $0x14] sm:$0xf]
    %v94 = vld [vmem:[%s3 + $0x18] sm:$0xf]
    %v95 = vld [vmem:[%s3 + $0x1c] sm:$0xf]
    %v96 = vld [vmem:[%s3 + $0x20] sm:$0xf]
    %v97 = vld [vmem:[%s3 + $0x24] sm:$0xf]
    %v98 = vld [vmem:[%s3 + $0x28] sm:$0xf]
    %v99 = vld [vmem:[%s3 + $0x2c] sm:$0xf]
    %v100 = vld [vmem:[%s3 + $0x30] sm:$0xf]
    %v101 = vld [vmem:[%s3 + $0x34] sm:$0xf]
    %v102 = vld [vmem:[%s3 + $0x38] sm:$0xf]
    %v103 = vld [vmem:[%s3 + $0x3c] sm:$0xf]
    %v104 = vld [vmem:[%s4] sm:$0x1]
    %v106 = vperm.slane %v104, 0
    %v124 = vunpack.c.l.b16 %v88
    %v125 = vunpack.c.l.b16 %v89
    %v126 = vunpack.c.l.b16 %v90
    %v127 = vunpack.c.l.b16 %v91
    %v128 = vunpack.c.l.b16 %v92
    %v129 = vunpack.c.l.b16 %v93
    %v130 = vunpack.c.l.b16 %v94
    %v131 = vunpack.c.l.b16 %v95
    %v132 = vunpack.c.l.b16 %v96
    %v133 = vunpack.c.l.b16 %v97
    %v134 = vunpack.c.l.b16 %v98
    %v135 = vunpack.c.l.b16 %v99
    %v136 = vunpack.c.l.b16 %v100
    %v137 = vunpack.c.l.b16 %v101
    %v138 = vunpack.c.l.b16 %v102
    %v139 = vunpack.c.l.b16 %v103
    %v140 = vpack.c.b16 %v125, %v124
    %v141 = vpack.c.b16 %v127, %v126
    %v142 = vpack.c.b16 %v129, %v128
    %v143 = vpack.c.b16 %v131, %v130
    %v144 = vpack.c.b16 %v133, %v132
    %v145 = vpack.c.b16 %v135, %v134
    %v146 = vpack.c.b16 %v137, %v136
    %v147 = vpack.c.b16 %v139, %v138
    %156 = vmatpush.bf16.msra.mxu0 %v147
    %157 = vmatpush.bf16.msra.mxu0 %v146
    %158 = vmatpush.bf16.msra.mxu0 %v145
    %159 = vmatpush.bf16.msra.mxu0 %v144
    %160 = vmatpush.bf16.msra.mxu0 %v143
    %161 = vmatpush.bf16.msra.mxu0 %v142
    %162 = vmatpush.bf16.msra.mxu0 %v141
    %163 = vmatpush.bf16.msra.mxu0 %v140
    %164 = vmatmul.bf16.gmra.mxu0 %v87
    %v165 = vpop.f32.mrf.mxu0
    %v166 = vadd.f32 %v106, %v165
    %v167 = vpop.f32.mrf.mxu0
    %v168 = vadd.f32 %v106, %v167
    %169 = vdwg.mxu0
    %v170 = vmax.f32 %v166, 0.0
    %v171 = vmax.f32 %v168, 0.0
    %v172 = vpack.c.bf16 %v171, %v170
    %v173 = vld [vmem:[%s5] sm:$0xf]
    %v174 = vld [vmem:[%s5 + $0x4] sm:$0xf]
    %v175 = vld [vmem:[%s5 + $0x8] sm:$0xf]
    %v176 = vld [vmem:[%s5 + $0xc] sm:$0xf]
    %v177 = vld [vmem:[%s5 + $0x10] sm:$0xf]
    %v178 = vld [vmem:[%s5 + $0x14] sm:$0xf]
    %v179 = vld [vmem:[%s5 + $0x18] sm:$0xf]
    %v180 = vld [vmem:[%s5 + $0x1c] sm:$0xf]
    %v181 = vld [vmem:[%s5 + $0x20] sm:$0xf]
    %v182 = vld [vmem:[%s5 + $0x24] sm:$0xf]
    %v183 = vld [vmem:[%s5 + $0x28] sm:$0xf]
    %v184 = vld [vmem:[%s5 + $0x2c] sm:$0xf]
    %v185 = vld [vmem:[%s5 + $0x30] sm:$0xf]
    %v186 = vld [vmem:[%s5 + $0x34] sm:$0xf]
    %v187 = vld [vmem:[%s5 + $0x38] sm:$0xf]
    %v188 = vld [vmem:[%s5 + $0x3c] sm:$0xf]
    %v189 = vld [vmem:[%s6] sm:$0x1]
    %v191 = vperm.slane %v189, 0
    %v209 = vunpack.c.l.b16 %v173
    %v210 = vunpack.c.l.b16 %v174
    %v211 = vunpack.c.l.b16 %v175
    %v212 = vunpack.c.l.b16 %v176
    %v213 = vunpack.c.l.b16 %v177
    %v214 = vunpack.c.l.b16 %v178
    %v215 = vunpack.c.l.b16 %v179
    %v216 = vunpack.c.l.b16 %v180
    %v217 = vunpack.c.l.b16 %v181
    %v218 = vunpack.c.l.b16 %v182
    %v219 = vunpack.c.l.b16 %v183
    %v220 = vunpack.c.l.b16 %v184
    %v221 = vunpack.c.l.b16 %v185
    %v222 = vunpack.c.l.b16 %v186
    %v223 = vunpack.c.l.b16 %v187
    %v224 = vunpack.c.l.b16 %v188
    %v225 = vpack.c.b16 %v210, %v209
    %v226 = vpack.c.b16 %v212, %v211
    %v227 = vpack.c.b16 %v214, %v213
    %v228 = vpack.c.b16 %v216, %v215
    %v229 = vpack.c.b16 %v218, %v217
    %v230 = vpack.c.b16 %v220, %v219
    %v231 = vpack.c.b16 %v222, %v221
    %v232 = vpack.c.b16 %v224, %v223
    %241 = vmatpush.bf16.msra.mxu0 %v232
    %242 = vmatpush.bf16.msra.mxu0 %v231
    %243 = vmatpush.bf16.msra.mxu0 %v230
    %244 = vmatpush.bf16.msra.mxu0 %v229
    %245 = vmatpush.bf16.msra.mxu0 %v228
    %246 = vmatpush.bf16.msra.mxu0 %v227
    %247 = vmatpush.bf16.msra.mxu0 %v226
    %248 = vmatpush.bf16.msra.mxu0 %v225
    %249 = vmatmul.bf16.gmra.mxu0 %v172
    %v250 = vpop.f32.mrf.mxu0
    %v251 = vadd.f32 %v191, %v250
    %v252 = vpop.f32.mrf.mxu0
    %v253 = vadd.f32 %v191, %v252
    %254 = vdwg.mxu0
    %v255 = vxor.u32 %v251, 2147483648
    %v256 = vxor.u32 %v253, 2147483648
    %v257 = vmul.f32 %v255, 1.442695
    %v258 = vpow.pop %v257
    %v259 = vmul.f32 %v256, 1.442695
    %v260 = vpow.pop %v259
    %v261 = vadd.f32 %v258, 1.0
    %v262 = vadd.f32 %v260, 1.0
    %v263 = vrcp.pop %v261
    %v264 = vmul.f32 %v261, %v263
    %v265 = vsub.f32 1.0, %v264
    %v266 = vmul.f32 %v263, %v265
    %v267 = vadd.f32 %v263, %v266
    %vm268 = vweird.f32 %v261
    %vm269 = vweird.f32 %v263
    %vm270 = vmor %vm268, %vm269
    %v271 = vsel %vm270, %v263, %v267
    %v272 = vand.u32 2147483647, %v261
    %vm273 = vcmp.eq.f32.partialorder %v272, 8.507059e+37
    %v274 = vand.u32 %v261, 2147483648
    %v275 = vor.u32 1.1754944e-38, %v274
    %v276 = vsel %vm273, %v275, %v271
    %v277 = vmul.f32 1.0, %v276
    %v278 = vrcp.pop %v262
    %v279 = vmul.f32 %v262, %v278
    %v280 = vsub.f32 1.0, %v279
    %v281 = vmul.f32 %v278, %v280
    %v282 = vadd.f32 %v278, %v281
    %vm283 = vweird.f32 %v262
    %vm284 = vweird.f32 %v278
    %vm285 = vmor %vm283, %vm284
    %v286 = vsel %vm285, %v278, %v282
    %v287 = vand.u32 2147483647, %v262
    %vm288 = vcmp.eq.f32.partialorder %v287, 8.507059e+37
    %v289 = vand.u32 %v262, 2147483648
    %v290 = vor.u32 1.1754944e-38, %v289
    %v291 = vsel %vm288, %v290, %v286
    %v292 = vmul.f32 1.0, %v291
    %v293 = vpack.c.bf16 %v277, %v277
    %v294 = vpack.c.bf16 %v292, %v292
    %vm295 = vcmask 125952
    %296 = vst.msk [vmem:[#allocation5] sm:$0xf] %vm295, %v293
    %297 = vst.msk [vmem:[#allocation5 + $0x4] sm:$0xf] %vm295, %v294
    // Predicated region
    $region34: #{tpu_custom_call.1} parent=1 // pred_check
      _
    $region35: #{tpu_custom_call.1} parent=1 // pred_check_branch
      %299 = sbr.rel (0) target = $region37
    $region36: #{tpu_custom_call.1} parent=1 // pred_region
      %301 = vsyncadd [#allocation4], 64
      %s302 = sshll.u32 [#allocation5], 4
      %s303 = int_to_ptr.vmem [resolvable:$true] %s302
      %s304 = sshll.u32 %s7, 4
      %s305 = int_to_ptr.hbm [resolvable:$true] %s304
      %310 = dma.vmem_to_hbm [thread:$0]  %s303, 64, %s305, [#allocation4], 64, 64, 4
    $region37: #{tpu_custom_call.1} parent=1 // pred_fallthru
      _
    // Predicated region
    $region38: #{tpu_custom_call.1} parent=1 // pred_check
      _
    $region39: #{tpu_custom_call.1} parent=1 // pred_check_branch
      %312 = sbr.rel (0) target = $region41
    $region40: #{tpu_custom_call.1} parent=1 // pred_region
      %314 = dma.done [#allocation4], 128
    $region41: #{tpu_custom_call.1} parent=1 // pred_fallthru
      _
    %315 = vsyncpa [#allocation3], 1
    %316 = vsyncpa [#allocation4], 1

// kernel: tpu_custom_call.1
$region0: #{tpu_custom_call.1}
  #allocation0 [shape = 'u32[]', space=smem, size = 0x4, offset = 0x4, fixed_abs, tag = 'smem constant byte address 0x4 - core index']
  #allocation1 [shape = 'u32[72,128]{1,0:T(1,128)}', space=vmem, size = 0x9000, scoped, tag = 'internal scratch']
  %s0 = inlined_call_operand.vmem [shape: f32[8,32], index: 0, kind: input, shape index: {}]
  %s1 = inlined_call_operand.hbm [shape: bf16[32,128], index: 1, kind: input, shape index: {}]
  %s2 = inlined_call_operand.vmem [shape: f32[1,128], index: 2, kind: input, shape index: {}]
  %s3 = inlined_call_operand.vmem [shape: bf16[128,128], index: 3, kind: input, shape index: {}]
  %s4 = inlined_call_operand.vmem [shape: f32[1,128], index: 4, kind: input, shape index: {}]
  %s5 = inlined_call_operand.vmem [shape: bf16[128,16], index: 5, kind: input, shape index: {}]
  %s6 = inlined_call_operand.vmem [shape: f32[1,16], index: 6, kind: input, shape index: {}]
  %s7 = inlined_call_operand.hbm [shape: bf16[8,16], index: 7, kind: output, shape index: {}]
  %s8 = sld [smem:[#allocation0]]
  $region42: #{tpu_custom_call.1} parent=0
    _
  %s10 = ssub.s32 1, %s8
  %s11 = scalar_select 0, %s10, %s8
  $region1: #{tpu_custom_call.1} parent=0
    #allocation2 [shape = 'u8[8192]{0}', space=vmem, size = 0x2000, scoped, tag = 'input window, operand 1, single buffered']
    #allocation3 [shape = 's32[1]{0}', space=sflag, size = 0x4, scoped, tag = 'scoped memory for tpu_custom_call.1']
    #allocation4 [shape = 's32[1]{0}', space=sflag, size = 0x4, scoped, tag = 'scoped memory for tpu_custom_call.1']
    #allocation5 [shape = 'u8[4096]{0}', space=vmem, size = 0x1000, scoped, tag = 'output window, operand 0, single buffered']
    %12 = vsyncpa [#allocation3], 0
    %13 = vsyncpa [#allocation4], 0
    // Predicated region
    $region2: #{tpu_custom_call.1} parent=1 // pred_check
      _
    $region3: #{tpu_custom_call.1} parent=1 // pred_check_branch
      %15 = sbr.rel (0) target = $region5
    $region4: #{tpu_custom_call.1} parent=1 // pred_region
      _
    $region5: #{tpu_custom_call.1} parent=1 // pred_fallthru
      _
    // Predicated region
    $region6: #{tpu_custom_call.1} parent=1 // pred_check
      _
    $region7: #{tpu_custom_call.1} parent=1 // pred_check_branch
      %17 = sbr.rel (0) target = $region9
    $region8: #{tpu_custom_call.1} parent=1 // pred_region
      %19 = vsyncadd [#allocation3], 0
      %s20 = sshll.u32 %s1, 4
      %s21 = int_to_ptr.hbm [resolvable:$true] %s20
      %s22 = sshll.u32 [#allocation2], 4
      %s23 = int_to_ptr.vmem [resolvable:$true] %s22
      %28 = dma.hbm_to_vmem [thread:$0]  %s21, 256, %s23, [#allocation3], 64, 64, 4
    $region9: #{tpu_custom_call.1} parent=1 // pred_fallthru
      _
    // Predicated region
    $region10: #{tpu_custom_call.1} parent=1 // pred_check
      _
    $region11: #{tpu_custom_call.1} parent=1 // pred_check_branch
      %30 = sbr.rel (0) target = $region13
    $region12: #{tpu_custom_call.1} parent=1 // pred_region
      _
    $region13: #{tpu_custom_call.1} parent=1 // pred_fallthru
      _
    // Predicated region
    $region14: #{tpu_custom_call.1} parent=1 // pred_check
      _
    $region15: #{tpu_custom_call.1} parent=1 // pred_check_branch
      %32 = sbr.rel (0) target = $region17
    $region16: #{tpu_custom_call.1} parent=1 // pred_region
      _
    $region17: #{tpu_custom_call.1} parent=1 // pred_fallthru
      _
    // Predicated region
    $region18: #{tpu_custom_call.1} parent=1 // pred_check
      _
    $region19: #{tpu_custom_call.1} parent=1 // pred_check_branch
      %34 = sbr.rel (0) target = $region21
    $region20: #{tpu_custom_call.1} parent=1 // pred_region
      _
    $region21: #{tpu_custom_call.1} parent=1 // pred_fallthru
      _
    // Predicated region
    $region22: #{tpu_custom_call.1} parent=1 // pred_check
      _
    $region23: #{tpu_custom_call.1} parent=1 // pred_check_branch
      %36 = sbr.rel (0) target = $region25
    $region24: #{tpu_custom_call.1} parent=1 // pred_region
      _
    $region25: #{tpu_custom_call.1} parent=1 // pred_fallthru
      _
    // Predicated region
    $region26: #{tpu_custom_call.1} parent=1 // pred_check
      _
    $region27: #{tpu_custom_call.1} parent=1 // pred_check_branch
      %38 = sbr.rel (0) target = $region29
    $region28: #{tpu_custom_call.1} parent=1 // pred_region
      _
    $region29: #{tpu_custom_call.1} parent=1 // pred_fallthru
      _
    // Predicated region
    $region30: #{tpu_custom_call.1} parent=1 // pred_check
      _
    $region31: #{tpu_custom_call.1} parent=1 // pred_check_branch
      %40 = sbr.rel (0) target = $region33
    $region32: #{tpu_custom_call.1} parent=1 // pred_region
      %42 = dma.done [#allocation3], 256
    $region33: #{tpu_custom_call.1} parent=1 // pred_fallthru
      _
    %v44 = vld [vmem:[%s0] sm:$0xff]
    %v45 = vld [vmem:[%s0 + $0x8] sm:$0xff]
    %v46 = vpack.c.bf16 %v45, %v44
    %v47 = vld [vmem:[#allocation2] sm:$0xf]
    %v48 = vld [vmem:[#allocation2 + $0x4] sm:$0xf]
    %v49 = vld [vmem:[#allocation2 + $0x8] sm:$0xf]
    %v50 = vld [vmem:[#allocation2 + $0xc] sm:$0xf]
    %v51 = vld [vmem:[%s2] sm:$0x1]
    %v53 = vperm.slane %v51, 0
    %v59 = vunpack.c.l.b16 %v47
    %v60 = vunpack.c.l.b16 %v48
    %v61 = vunpack.c.l.b16 %v49
    %v62 = vunpack.c.l.b16 %v50
    %v63 = vpack.c.b16 %v60, %v59
    %v64 = vpack.c.b16 %v62, %v61
    %vm67 = vcmask 261120
    %v69 = vsel %vm67, %v46, 0
    %71 = vmatpush.bf16.msra.mxu0 0
    %72 = vmatpush.bf16.msra.mxu0 0
    %73 = vmatpush.bf16.msra.mxu0 0
    %74 = vmatpush.bf16.msra.mxu0 0
    %75 = vmatpush.bf16.msra.mxu0 0
    %76 = vmatpush.bf16.msra.mxu0 0
    %77 = vmatpush.bf16.msra.mxu0 %v64
    %78 = vmatpush.bf16.msra.mxu0 %v63
    %79 = vmatmul.bf16.gmra.mxu0 %v69
    %v80 = vpop.f32.mrf.mxu0
    %v81 = vadd.f32 %v53, %v80
    %v82 = vpop.f32.mrf.mxu0
    %v83 = vadd.f32 %v53, %v82
    %84 = vdwg.mxu0
    %v85 = vmax.f32 %v81, 0.0
    %v86 = vmax.f32 %v83, 0.0
    %v87 = vpack.c.bf16 %v86, %v85
    %v88 = vld [vmem:[%s3] sm:$0xf]
    %v89 = vld [vmem:[%s3 + $0x4] sm:$0xf]
    %v90 = vld [vmem:[%s3 + $0x8] sm:$0xf]
    %v91 = vld [vmem:[%s3 + $0xc] sm:$0xf]
    %v92 = vld [vmem:[%s3 + $0x10] sm:$0xf]
    %v93 = vld [vmem:[%s3 + $0x14] sm:$0xf]
    %v94 = vld [vmem:[%s3 + $0x18] sm:$0xf]
    %v95 = vld [vmem:[%s3 + $0x1c] sm:$0xf]
    %v96 = vld [vmem:[%s3 + $0x20] sm:$0xf]
    %v97 = vld [vmem:[%s3 + $0x24] sm:$0xf]
    %v98 = vld [vmem:[%s3 + $0x28] sm:$0xf]
    %v99 = vld [vmem:[%s3 + $0x2c] sm:$0xf]
    %v100 = vld [vmem:[%s3 + $0x30] sm:$0xf]
    %v101 = vld [vmem:[%s3 + $0x34] sm:$0xf]
    %v102 = vld [vmem:[%s3 + $0x38] sm:$0xf]
    %v103 = vld [vmem:[%s3 + $0x3c] sm:$0xf]
    %v104 = vld [vmem:[%s4] sm:$0x1]
    %v106 = vperm.slane %v104, 0
    %v124 = vunpack.c.l.b16 %v88
    %v125 = vunpack.c.l.b16 %v89
    %v126 = vunpack.c.l.b16 %v90
    %v127 = vunpack.c.l.b16 %v91
    %v128 = vunpack.c.l.b16 %v92
    %v129 = vunpack.c.l.b16 %v93
    %v130 = vunpack.c.l.b16 %v94
    %v131 = vunpack.c.l.b16 %v95
    %v132 = vunpack.c.l.b16 %v96
    %v133 = vunpack.c.l.b16 %v97
    %v134 = vunpack.c.l.b16 %v98
    %v135 = vunpack.c.l.b16 %v99
    %v136 = vunpack.c.l.b16 %v100
    %v137 = vunpack.c.l.b16 %v101
    %v138 = vunpack.c.l.b16 %v102
    %v139 = vunpack.c.l.b16 %v103
    %v140 = vpack.c.b16 %v125, %v124
    %v141 = vpack.c.b16 %v127, %v126
    %v142 = vpack.c.b16 %v129, %v128
    %v143 = vpack.c.b16 %v131, %v130
    %v144 = vpack.c.b16 %v133, %v132
    %v145 = vpack.c.b16 %v135, %v134
    %v146 = vpack.c.b16 %v137, %v136
    %v147 = vpack.c.b16 %v139, %v138
    %156 = vmatpush.bf16.msra.mxu0 %v147
    %157 = vmatpush.bf16.msra.mxu0 %v146
    %158 = vmatpush.bf16.msra.mxu0 %v145
    %159 = vmatpush.bf16.msra.mxu0 %v144
    %160 = vmatpush.bf16.msra.mxu0 %v143
    %161 = vmatpush.bf16.msra.mxu0 %v142
    %162 = vmatpush.bf16.msra.mxu0 %v141
    %163 = vmatpush.bf16.msra.mxu0 %v140
    %164 = vmatmul.bf16.gmra.mxu0 %v87
    %v165 = vpop.f32.mrf.mxu0
    %v166 = vadd.f32 %v106, %v165
    %v167 = vpop.f32.mrf.mxu0
    %v168 = vadd.f32 %v106, %v167
    %169 = vdwg.mxu0
    %v170 = vmax.f32 %v166, 0.0
    %v171 = vmax.f32 %v168, 0.0
    %v172 = vpack.c.bf16 %v171, %v170
    %v173 = vld [vmem:[%s5] sm:$0xf]
    %v174 = vld [vmem:[%s5 + $0x4] sm:$0xf]
    %v175 = vld [vmem:[%s5 + $0x8] sm:$0xf]
    %v176 = vld [vmem:[%s5 + $0xc] sm:$0xf]
    %v177 = vld [vmem:[%s5 + $0x10] sm:$0xf]
    %v178 = vld [vmem:[%s5 + $0x14] sm:$0xf]
    %v179 = vld [vmem:[%s5 + $0x18] sm:$0xf]
    %v180 = vld [vmem:[%s5 + $0x1c] sm:$0xf]
    %v181 = vld [vmem:[%s5 + $0x20] sm:$0xf]
    %v182 = vld [vmem:[%s5 + $0x24] sm:$0xf]
    %v183 = vld [vmem:[%s5 + $0x28] sm:$0xf]
    %v184 = vld [vmem:[%s5 + $0x2c] sm:$0xf]
    %v185 = vld [vmem:[%s5 + $0x30] sm:$0xf]
    %v186 = vld [vmem:[%s5 + $0x34] sm:$0xf]
    %v187 = vld [vmem:[%s5 + $0x38] sm:$0xf]
    %v188 = vld [vmem:[%s5 + $0x3c] sm:$0xf]
    %v189 = vld [vmem:[%s6] sm:$0x1]
    %v191 = vperm.slane %v189, 0
    %v209 = vunpack.c.l.b16 %v173
    %v210 = vunpack.c.l.b16 %v174
    %v211 = vunpack.c.l.b16 %v175
    %v212 = vunpack.c.l.b16 %v176
    %v213 = vunpack.c.l.b16 %v177
    %v214 = vunpack.c.l.b16 %v178
    %v215 = vunpack.c.l.b16 %v179
    %v216 = vunpack.c.l.b16 %v180
    %v217 = vunpack.c.l.b16 %v181
    %v218 = vunpack.c.l.b16 %v182
    %v219 = vunpack.c.l.b16 %v183
    %v220 = vunpack.c.l.b16 %v184
    %v221 = vunpack.c.l.b16 %v185
    %v222 = vunpack.c.l.b16 %v186
    %v223 = vunpack.c.l.b16 %v187
    %v224 = vunpack.c.l.b16 %v188
    %v225 = vpack.c.b16 %v210, %v209
    %v226 = vpack.c.b16 %v212, %v211
    %v227 = vpack.c.b16 %v214, %v213
    %v228 = vpack.c.b16 %v216, %v215
    %v229 = vpack.c.b16 %v218, %v217
    %v230 = vpack.c.b16 %v220, %v219
    %v231 = vpack.c.b16 %v222, %v221
    %v232 = vpack.c.b16 %v224, %v223
    %241 = vmatpush.bf16.msra.mxu0 %v232
    %242 = vmatpush.bf16.msra.mxu0 %v231
    %243 = vmatpush.bf16.msra.mxu0 %v230
    %244 = vmatpush.bf16.msra.mxu0 %v229
    %245 = vmatpush.bf16.msra.mxu0 %v228
    %246 = vmatpush.bf16.msra.mxu0 %v227
    %247 = vmatpush.bf16.msra.mxu0 %v226
    %248 = vmatpush.bf16.msra.mxu0 %v225
    %249 = vmatmul.bf16.gmra.mxu0 %v172
    %v250 = vpop.f32.mrf.mxu0
    %v251 = vadd.f32 %v191, %v250
    %v252 = vpop.f32.mrf.mxu0
    %v253 = vadd.f32 %v191, %v252
    %254 = vdwg.mxu0
    %v255 = vxor.u32 %v251, 2147483648
    %v256 = vxor.u32 %v253, 2147483648
    %v257 = vmul.f32 %v255, 1.442695
    %v258 = vpow.pop %v257
    %v259 = vmul.f32 %v256, 1.442695
    %v260 = vpow.pop %v259
    %v261 = vadd.f32 %v258, 1.0
    %v262 = vadd.f32 %v260, 1.0
    %v263 = vrcp.pop %v261
    %v264 = vmul.f32 %v261, %v263
    %v265 = vsub.f32 1.0, %v264
    %v266 = vmul.f32 %v263, %v265
    %v267 = vadd.f32 %v263, %v266
    %vm268 = vweird.f32 %v261
    %vm269 = vweird.f32 %v263
    %vm270 = vmor %vm268, %vm269
    %v271 = vsel %vm270, %v263, %v267
    %v272 = vand.u32 2147483647, %v261
    %vm273 = vcmp.eq.f32.partialorder %v272, 8.507059e+37
    %v274 = vand.u32 %v261, 2147483648
    %v275 = vor.u32 1.1754944e-38, %v274
    %v276 = vsel %vm273, %v275, %v271
    %v277 = vmul.f32 1.0, %v276
    %v278 = vrcp.pop %v262
    %v279 = vmul.f32 %v262, %v278
    %v280 = vsub.f32 1.0, %v279
    %v281 = vmul.f32 %v278, %v280
    %v282 = vadd.f32 %v278, %v281
    %vm283 = vweird.f32 %v262
    %vm284 = vweird.f32 %v278
    %vm285 = vmor %vm283, %vm284
    %v286 = vsel %vm285, %v278, %v282
    %v287 = vand.u32 2147483647, %v262
    %vm288 = vcmp.eq.f32.partialorder %v287, 8.507059e+37
    %v289 = vand.u32 %v262, 2147483648
    %v290 = vor.u32 1.1754944e-38, %v289
    %v291 = vsel %vm288, %v290, %v286
    %v292 = vmul.f32 1.0, %v291
    %v293 = vpack.c.bf16 %v277, %v277
    %v294 = vpack.c.bf16 %v292, %v292
    %vm295 = vcmask 125952
    %296 = vst.msk [vmem:[#allocation5] sm:$0xf] %vm295, %v293
    %297 = vst.msk [vmem:[#allocation5 + $0x4] sm:$0xf] %vm295, %v294
    // Predicated region
    $region34: #{tpu_custom_call.1} parent=1 // pred_check
      _
    $region35: #{tpu_custom_call.1} parent=1 // pred_check_branch
      %299 = sbr.rel (0) target = $region37
    $region36: #{tpu_custom_call.1} parent=1 // pred_region
      %301 = vsyncadd [#allocation4], 64
      %s302 = sshll.u32 [#allocation5], 4
      %s303 = int_to_ptr.vmem [resolvable:$true] %s302
      %s304 = sshll.u32 %s7, 4
      %s305 = int_to_ptr.hbm [resolvable:$true] %s304
      %310 = dma.vmem_to_hbm [thread:$0]  %s303, 64, %s305, [#allocation4], 64, 64, 4
    $region37: #{tpu_custom_call.1} parent=1 // pred_fallthru
      _
    // Predicated region
    $region38: #{tpu_custom_call.1} parent=1 // pred_check
      _
    $region39: #{tpu_custom_call.1} parent=1 // pred_check_branch
      %312 = sbr.rel (0) target = $region41
    $region40: #{tpu_custom_call.1} parent=1 // pred_region
      %314 = dma.done [#allocation4], 128
    $region41: #{tpu_custom_call.1} parent=1 // pred_fallthru
      _
    %315 = vsyncpa [#allocation3], 1
    %316 = vsyncpa [#allocation4], 1

</llo_original>
